<compile_context>
chip_gen: v7x
topology: tpu7x:2x2x1
jax: 0.10.0
libtpu: 0.0.40
codegen_flags: <defaults>
</compile_context>

<pallas_src>
import functools
import math

import jax
import jax.numpy as jnp
import numpy as np
from jax.experimental import pallas as pl
from jax.experimental.pallas import tpu as pltpu


# Fixed backlash parameters (m_lo, m_up, c_lo, c_up).
P_STAIR = (0.2946, 0.2805, 0.7793, 0.7425)
P_OTHER = (0.2891, 0.2655, 0.7899, 0.7924)

_COLS = 128                         # lane-dense width (multiple of 128 -> unmasked vst)
_MAX_BLOCK_BYTES = 2 * 1024 * 1024  # ~2 MiB per operand block (3 x 2 x 2 MiB = 12 MiB VMEM)


def _cdiv(a, b):
    return -(-a // b)


def _round_up(a, b):
    return _cdiv(a, b) * b


def _sublane(dtype):
    """Minimum sublane multiple for a dtype: 8 (4B), 16 (2B), 32 (1B)."""
    itemsize = jnp.dtype(dtype).itemsize
    return max(8, 32 // max(itemsize, 1))


def _backlash_kernel(x_ref, prev_ref, out_ref, *, m_lo, m_up, mlo_clo, mup_cup):
    """Elementwise fixed-backlash update on one (block_rows, 128) tile.

    prev_ref is either a (block_rows, 128) tile or a (1, 1) scalar block
    (broadcast inside the kernel).
    """
    x = x_ref[...]
    prev = prev_ref[...]

    lo = m_lo * x + mlo_clo          # m_lo * x + m_lo * c_lo
    up = m_up * x + mup_cup          # m_up * x + m_up * c_up

    # h(s1) with s1 = (lo - prev)/m_lo: m_lo in (0,1) so the divide cannot
    # change the sign -> compare lo <= prev directly.  Same for s2 / m_up.
    b1 = lo <= prev
    b2 = prev <= up

    zero = jnp.zeros((), dtype=x.dtype)
    # Exact torch blend (b1 and b2 may both hold -> out = lo + up).
    out_ref[...] = (jnp.where(b1, lo, zero)
                    + jnp.where(b2, up, zero)
                    + jnp.where(b1 | b2, zero, prev))


def fixed_backlash_tip_y(x, out_prev, datatype="stair"):
    """Pallas implementation of fixedBacklashTipY.forward(x, _out_prev)."""
    p = P_STAIR if datatype == "stair" else P_OTHER
    # Fold constants in float32 so the switching boundary matches torch exactly.
    m_lo32, m_up32, c_lo32, c_up32 = (np.float32(v) for v in p)
    # Division elision below is only sign-safe for 0 < m < 1.
    assert 0.0 < float(m_lo32) < 1.0 and 0.0 < float(m_up32) < 1.0
    consts = dict(
        m_lo=float(m_lo32),
        m_up=float(m_up32),
        mlo_clo=float(np.float32(m_lo32 * c_lo32)),
        mup_cup=float(np.float32(m_up32 * c_up32)),
    )

    x = jnp.asarray(x)
    dt = x.dtype
    out_prev = jnp.asarray(out_prev).astype(dt)
    out_shape = jnp.broadcast_shapes(x.shape, out_prev.shape)
    n = math.prod(out_shape)
    if n == 0:
        return jnp.zeros(out_shape, dt)

    # --- operand preparation (avoid materializing broadcasts / copies) -------
    scalar_prev = (out_prev.size == 1)
    if scalar_prev:
        x_full = jnp.broadcast_to(x, out_shape) if x.shape != out_shape else x
        prev_small = out_prev.reshape(1, 1)
        prev_full = None
    elif tuple(x.shape) == tuple(out_prev.shape):
        x_full, prev_full = x, out_prev
    else:
        x_full, prev_full = jnp.broadcast_arrays(x, out_prev)
        x_full = jnp.broadcast_to(x_full, out_shape)
        prev_full = jnp.broadcast_to(prev_full, out_shape)

    # --- flatten to a lane-dense (rows, 128) slab --------------------------
    # If n is a multiple of 128 this is a zero-copy reshape (no pad, no slice).
    sub = _sublane(dt)
    cols = _COLS
    x_flat = x_full.reshape(-1)
    prev_flat = None if scalar_prev else prev_full.reshape(-1)

    if n % cols == 0:
        n_pad = n
    else:
        # Ragged tail: pad at most one sublane row-group (<= sub*128 - 1 elems).
        n_pad = _round_up(n, sub * cols)
        pad = n_pad - n
        x_flat = jnp.pad(x_flat, (0, pad))
        if not scalar_prev:
            prev_flat = jnp.pad(prev_flat, (0, pad))

    rows = n_pad // cols
    x2 = x_flat.reshape(rows, cols)
    prev2 = None if scalar_prev else prev_flat.reshape(rows, cols)

    # --- block sizing --------------------------------------------------------
    itemsize = jnp.dtype(dt).itemsize
    max_block_rows = max(sub, (_MAX_BLOCK_BYTES // (cols * itemsize)) // sub * sub)
    if rows >= 2 * sub:
        # Guarantee >= 2 grid blocks so the "parallel" axis can use both v7x TCs.
        block_rows = min(max_block_rows, _round_up(_cdiv(rows, 2), sub))
    else:
        block_rows = min(max_block_rows, _round_up(rows, sub))
    block_rows = min(block_rows, rows)      # tiny inputs: block == full array
    grid = (_cdiv(rows, block_rows),)       # last block may be partial (masked)

    blk = pl.BlockSpec((block_rows, cols), lambda i: (i, 0))
    if scalar_prev:
        in_specs = [blk, pl.BlockSpec((1, 1), lambda i: (0, 0))]
        operands = (x2, prev_small)
    else:
        in_specs = [blk, blk]
        operands = (x2, prev2)

    kernel = functools.partial(_backlash_kernel, **consts)
    out2 = pl.pallas_call(
        kernel,
        out_shape=jax.ShapeDtypeStruct((rows, cols), dt),
        grid=grid,
        in_specs=in_specs,
        out_specs=blk,
        compiler_params=pltpu.CompilerParams(
            dimension_semantics=("parallel",),
            vmem_limit_bytes=32 * 1024 * 1024,
        ),
    )(*operands)

    out_flat = out2.reshape(-1)
    if n_pad != n:
        out_flat = out_flat[:n]
    return out_flat.reshape(out_shape)


def _reference_forward(x, out_prev, datatype="stair"):
    """Pure-numpy reference reproducing the torch formula (with the divides)."""
    p = P_STAIR if datatype == "stair" else P_OTHER
    m_lo, m_up, c_lo, c_up = (np.float32(v) for v in p)
    x = np.asarray(x, dtype=np.float32)
    prev = np.asarray(out_prev, dtype=np.float32)
    x, prev = np.broadcast_arrays(x, prev)

    s1 = (m_lo * x + m_lo * c_lo - prev) / m_lo
    s2 = (prev - m_up * x - m_up * c_up) / m_up
    f1 = np.where(s1 <= 0, np.float32(1.0), np.float32(0.0))
    f2 = np.where(s2 <= 0, np.float32(1.0), np.float32(0.0))
    return (m_lo * x * f1 + m_lo * c_lo * f1
            + m_up * x * f2 + m_up * c_up * f2
            + prev * (1 - f1) * (1 - f2))


if __name__ == "__main__":
    key = jax.random.PRNGKey(0)
    k1, k2, k3, k4, k5 = jax.random.split(key, 5)

    # Small shape matching the module's typical (batch, seq, 1) usage.
    x = jax.random.normal(k1, (2, 8, 1), dtype=jnp.float32) * 2.0
    out_prev = jax.random.normal(k2, (2, 8, 1), dtype=jnp.float32)
    for datatype in ("stair", "other"):
        out = fixed_backlash_tip_y(x, out_prev, datatype=datatype)
        jax.block_until_ready(out)
        ref = _reference_forward(x, out_prev, datatype=datatype)
        np.testing.assert_allclose(np.asarray(out), ref, rtol=1e-5, atol=1e-5)
        assert out.shape == x.shape

    # Scalar previous-output: exercises the broadcast path (only x is streamed).
    out_s = fixed_backlash_tip_y(x, jnp.float32(0.3))
    jax.block_until_ready(out_s)
    np.testing.assert_allclose(
        np.asarray(out_s), _reference_forward(x, np.float32(0.3)),
        rtol=1e-5, atol=1e-5)
    assert out_s.shape == x.shape

    # Larger shape: n = 160000 is a multiple of 128 -> zero-copy reshape (no
    # pad / no output slice) and a multi-block "parallel" grid.
    xl = jax.random.normal(k3, (4, 40000, 1), dtype=jnp.float32) * 3.0
    prevl = jax.random.normal(k4, (4, 40000, 1), dtype=jnp.float32)
    outl = fixed_backlash_tip_y(xl, prevl)
    jax.block_until_ready(outl)
    np.testing.assert_allclose(
        np.asarray(outl), _reference_forward(xl, prevl), rtol=1e-5, atol=1e-5)
    assert outl.shape == xl.shape

    # Ragged size (n % 128 != 0) exercises the small padded-tail path.
    xr = jax.random.normal(k5, (3, 1001, 1), dtype=jnp.float32)
    prevr = xr * 0.5
    outr = fixed_backlash_tip_y(xr, prevr)
    jax.block_until_ready(outr)
    np.testing.assert_allclose(
        np.asarray(outr), _reference_forward(xr, prevr), rtol=1e-5, atol=1e-5)
    assert outr.shape == xr.shape

    print("KERNEL_OK")
</pallas_src>

<mosaic_0001>
module attributes {stable_mosaic.version = 11 : i64} {
  func.func @_backlash_kernel(%arg0: i32, %arg1: memref<8x128xf32, #tpu.memory_space<vmem>>, %arg2: memref<8x128xf32, #tpu.memory_space<vmem>>, %arg3: memref<8x128xf32, #tpu.memory_space<vmem>>) attributes {dimension_semantics = [#tpu.dimension_semantics<parallel>], iteration_bounds = array<i64: 1>, scalar_prefetch = 0 : i64, scratch_operands = 0 : i64, tpu.core_type = #tpu.core_type<tc>, window_params = [{transform_indices = @transform_0, window_bounds = array<i64: 8, 128>}, {transform_indices = @transform_1, window_bounds = array<i64: 8, 128>}, {transform_indices = @transform_2, window_bounds = array<i64: 8, 128>}]} {
    %c0 = arith.constant 0 : index
    %c0_0 = arith.constant 0 : index
    %0 = vector.load %arg1[%c0, %c0_0] : memref<8x128xf32, #tpu.memory_space<vmem>>, vector<8x128xf32>
    %c0_1 = arith.constant 0 : index
    %c0_2 = arith.constant 0 : index
    %1 = vector.load %arg2[%c0_1, %c0_2] : memref<8x128xf32, #tpu.memory_space<vmem>>, vector<8x128xf32>
    %cst = arith.constant 2.946000e-01 : f32
    %2 = vector.broadcast %cst : f32 to vector<8x128xf32>
    %3 = arith.mulf %2, %0 : vector<8x128xf32>
    %cst_3 = arith.constant 0.229581773 : f32
    %4 = vector.broadcast %cst_3 : f32 to vector<8x128xf32>
    %5 = arith.addf %3, %4 : vector<8x128xf32>
    %cst_4 = arith.constant 2.805000e-01 : f32
    %6 = vector.broadcast %cst_4 : f32 to vector<8x128xf32>
    %7 = arith.mulf %6, %0 : vector<8x128xf32>
    %cst_5 = arith.constant 0.20827125 : f32
    %8 = vector.broadcast %cst_5 : f32 to vector<8x128xf32>
    %9 = arith.addf %7, %8 : vector<8x128xf32>
    %10 = arith.cmpf ole, %5, %1 : vector<8x128xf32>
    %11 = arith.cmpf ole, %1, %9 : vector<8x128xf32>
    %cst_6 = arith.constant 0.000000e+00 : f32
    %12 = vector.broadcast %cst_6 : f32 to vector<8x128xf32>
    %13 = arith.select %10, %5, %12 : vector<8x128xi1>, vector<8x128xf32>
    %cst_7 = arith.constant 0.000000e+00 : f32
    %14 = vector.broadcast %cst_7 : f32 to vector<8x128xf32>
    %15 = arith.select %11, %9, %14 : vector<8x128xi1>, vector<8x128xf32>
    %16 = arith.addf %13, %15 : vector<8x128xf32>
    %17 = arith.ori %10, %11 : vector<8x128xi1>
    %cst_8 = arith.constant 0.000000e+00 : f32
    %18 = vector.broadcast %cst_8 : f32 to vector<8x128xf32>
    %19 = arith.select %17, %18, %1 : vector<8x128xi1>, vector<8x128xf32>
    %20 = arith.addf %16, %19 : vector<8x128xf32>
    %c0_9 = arith.constant 0 : index
    %c0_10 = arith.constant 0 : index
    %21 = vector.load %arg3[%c0_9, %c0_10] : memref<8x128xf32, #tpu.memory_space<vmem>>, vector<8x128xf32>
    tpu.vector_store %arg3[%c0_9, %c0_10], %20 {strides = array<i32>} : memref<8x128xf32, #tpu.memory_space<vmem>>, vector<8x128xf32>,
    return
  }
  func.func @transform_0(%arg0: i32) -> (i32, i32) {
    %c0_i32 = arith.constant 0 : i32
    %c0_i32_0 = arith.constant 0 : i32
    return %arg0, %c0_i32 : i32, i32
  }
  func.func @transform_1(%arg0: i32) -> (i32, i32) {
    %c0_i32 = arith.constant 0 : i32
    %c0_i32_0 = arith.constant 0 : i32
    return %arg0, %c0_i32 : i32, i32
  }
  func.func @transform_2(%arg0: i32) -> (i32, i32) {
    %c0_i32 = arith.constant 0 : i32
    %c0_i32_0 = arith.constant 0 : i32
    return %arg0, %c0_i32 : i32, i32
  }
}

</mosaic_0001>

<llo_original>
// kernel: tpu_custom_call.1
$region0: #{tpu_custom_call.1}
  #allocation0 [shape = 'u32[]', space=smem, size = 0x4, offset = 0x4, fixed_abs, tag = 'smem constant byte address 0x4 - core index']
  #allocation1 [shape = 'u32[144,128]{1,0:T(1,128)}', space=vmem, size = 0x12000, scoped, tag = 'internal scratch']
  %s0 = inlined_call_operand.hbm [shape: f32[8,128], index: 0, kind: input, shape index: {}]
  %s1 = inlined_call_operand.hbm [shape: f32[8,128], index: 1, kind: input, shape index: {}]
  %s2 = inlined_call_operand.hbm [shape: f32[8,128], index: 2, kind: output, shape index: {}]
  %s3 = sld [smem:[#allocation0]]
  $region26: #{tpu_custom_call.1} parent=0
    _
  %s5 = ssub.s32 1, %s3
  %s6 = scalar_select 0, %s5, %s3
  $region1: #{tpu_custom_call.1} parent=0
    #allocation2 [shape = 'u8[4096]{0}', space=vmem, size = 0x1000, scoped, tag = 'input window, operand 0, single buffered']
    #allocation3 [shape = 's32[1]{0}', space=sflag, size = 0x4, scoped, tag = 'scoped memory for tpu_custom_call.1']
    #allocation4 [shape = 's32[1]{0}', space=sflag, size = 0x4, scoped, tag = 'scoped memory for tpu_custom_call.1']
    #allocation5 [shape = 'u8[4096]{0}', space=vmem, size = 0x1000, scoped, tag = 'input window, operand 1, single buffered']
    #allocation6 [shape = 's32[1]{0}', space=sflag, size = 0x4, scoped, tag = 'scoped memory for tpu_custom_call.1']
    #allocation7 [shape = 'u8[4096]{0}', space=vmem, size = 0x1000, scoped, tag = 'output window, operand 0, single buffered']
    %7 = vsyncpa [#allocation3], 0
    %8 = vsyncpa [#allocation6], 0
    %9 = vsyncpa [#allocation4], 0
    // Predicated region
    $region2: #{tpu_custom_call.1} parent=1 // pred_check
      _
    $region3: #{tpu_custom_call.1} parent=1 // pred_check_branch
      %11 = sbr.rel (0) target = $region5
    $region4: #{tpu_custom_call.1} parent=1 // pred_region
      %s13 = ssub.s32 128, 128
      %14 = vsyncadd [#allocation3], %s13
      %s16 = sshll.u32 [#allocation2], 4
      %s17 = int_to_ptr.vmem [resolvable:$true] %s16
      %19 = dma.hbm_to_vmem [thread:$0]  %s0, 128, %s17, [#allocation3]
    $region5: #{tpu_custom_call.1} parent=1 // pred_fallthru
      _
    // Predicated region
    $region6: #{tpu_custom_call.1} parent=1 // pred_check
      _
    $region7: #{tpu_custom_call.1} parent=1 // pred_check_branch
      %21 = sbr.rel (0) target = $region9
    $region8: #{tpu_custom_call.1} parent=1 // pred_region
      %s23 = ssub.s32 128, 128
      %24 = vsyncadd [#allocation6], %s23
      %s26 = sshll.u32 [#allocation5], 4
      %s27 = int_to_ptr.vmem [resolvable:$true] %s26
      %29 = dma.hbm_to_vmem [thread:$0]  %s1, 128, %s27, [#allocation6]
    $region9: #{tpu_custom_call.1} parent=1 // pred_fallthru
      _
    // Predicated region
    $region10: #{tpu_custom_call.1} parent=1 // pred_check
      _
    $region11: #{tpu_custom_call.1} parent=1 // pred_check_branch
      %31 = sbr.rel (0) target = $region13
    $region12: #{tpu_custom_call.1} parent=1 // pred_region
      %32 = dma.done [#allocation3], 128
    $region13: #{tpu_custom_call.1} parent=1 // pred_fallthru
      _
    // Predicated region
    $region14: #{tpu_custom_call.1} parent=1 // pred_check
      _
    $region15: #{tpu_custom_call.1} parent=1 // pred_check_branch
      %34 = sbr.rel (0) target = $region17
    $region16: #{tpu_custom_call.1} parent=1 // pred_region
      %35 = dma.done [#allocation6], 128
    $region17: #{tpu_custom_call.1} parent=1 // pred_fallthru
      _
    %v36 = vld [vmem:[#allocation2] sm:$0xff]
    %v37 = vld [vmem:[#allocation5] sm:$0xff]
    %v38 = vmul.f32 %v36, 0.2946
    %v39 = vadd.f32 %v38, 0.22958177
    %v40 = vmul.f32 %v36, 0.2805
    %v41 = vadd.f32 %v40, 0.20827125
    %vm42 = vcmp.le.f32.partialorder %v39, %v37
    %vm43 = vcmp.le.f32.partialorder %v37, %v41
    %v44 = vsel %vm42, %v39, 0.0
    %v45 = vsel %vm43, %v41, 0.0
    %v46 = vadd.f32 %v44, %v45
    %vm47 = vmor %vm42, %vm43
    %v48 = vsel %vm47, 0.0, %v37
    %v49 = vadd.f32 %v46, %v48
    %50 = vst [vmem:[#allocation7] sm:$0xff] %v49
    // Predicated region
    $region18: #{tpu_custom_call.1} parent=1 // pred_check
      _
    $region19: #{tpu_custom_call.1} parent=1 // pred_check_branch
      %52 = sbr.rel (0) target = $region21
    $region20: #{tpu_custom_call.1} parent=1 // pred_region
      %s54 = ssub.s32 128, 128
      %55 = vsyncadd [#allocation4], %s54
      %s57 = sshll.u32 [#allocation7], 4
      %s58 = int_to_ptr.vmem [resolvable:$true] %s57
      %60 = dma.vmem_to_hbm [thread:$0]  %s58, 128, %s2, [#allocation4]
    $region21: #{tpu_custom_call.1} parent=1 // pred_fallthru
      _
    // Predicated region
    $region22: #{tpu_custom_call.1} parent=1 // pred_check
      _
    $region23: #{tpu_custom_call.1} parent=1 // pred_check_branch
      %62 = sbr.rel (0) target = $region25
    $region24: #{tpu_custom_call.1} parent=1 // pred_region
      %63 = dma.done [#allocation4], 128
    $region25: #{tpu_custom_call.1} parent=1 // pred_fallthru
      _
    %64 = vsyncpa [#allocation3], 1
    %65 = vsyncpa [#allocation6], 1
    %66 = vsyncpa [#allocation4], 1

</llo_original>
